<compile_context>
chip_gen: v7x
topology: tpu7x:2x2x1
jax: 0.10.0
libtpu: 0.0.40
codegen_flags: <defaults>
</compile_context>

<pallas_src>
import functools

import jax
import jax.numpy as jnp
from jax import lax
from jax.experimental import pallas as pl
from jax.experimental.pallas import tpu as pltpu

LAMBDA_CLASS = 1.0
LAMBDA_NOOBJ = 10.0
LAMBDA_OBJ = 1.0
LAMBDA_BOX = 10.0

_GC = 8            # sublane rows per in-kernel chunk (one f32 vreg tall)
_CLASS_CHUNK = 8   # classes streamed per step (caps live vregs at C=80)


def _bce_with_logits(x, z):
    # numerically stable BCEWithLogits: max(x,0) - x*z + log1p(exp(-|x|))
    return jnp.maximum(x, 0.0) - x * z + jnp.log1p(jnp.exp(-jnp.abs(x)))


def _yolo_loss_kernel(anc_ref, pred_ref, tgt_ref, out_ref, *, n_class):
    """Accumulate 6 per-anchor partial sums over one (D, gs, 128) cell block."""
    a = pl.program_id(1)          # anchor index
    i = pl.program_id(2)          # cell-block index (reduction axis)

    @pl.when(i == 0)
    def _init():
        out_ref[...] = jnp.zeros(out_ref.shape, out_ref.dtype)

    # Per-anchor scalars from SMEM: [w, h, 1/w, 1/h]
    anc_w = anc_ref[a, 0]
    anc_h = anc_ref[a, 1]
    inv_w = anc_ref[a, 2]
    inv_h = anc_ref[a, 3]

    gc = _GC
    gs = pred_ref.shape[1]        # sublane rows in this block (static)
    nc = gs // gc                 # in-kernel chunks            (static)
    zeros = jnp.zeros((gc, 128), jnp.float32)

    def chunk(c, accs):
        acc_noobj, acc_obj, acc_box, acc_ce, acc_nobj, acc_nnoobj = accs
        off = c * gc
        if not isinstance(off, int):
            off = pl.multiple_of(off, gc)        # aligned-vld hint
        sl = pl.ds(off, gc)

        # objectness flag: 1 -> obj, 0 -> noobj, -1 (pad sentinel) -> neither
        tflag = tgt_ref[0, sl, :].astype(jnp.float32)
        obj_m = tflag == 1.0
        noobj_m = tflag == 0.0

        # shared BCE-with-logits base: max(x,0) + log1p(exp(-|x|))
        x = pred_ref[0, sl, :].astype(jnp.float32)
        bce_base = jnp.maximum(x, 0.0) + jnp.log1p(jnp.exp(-jnp.abs(x)))
        acc_noobj = acc_noobj + jnp.where(noobj_m, bce_base, 0.0)

        # decoded prediction box (midpoint) & IoU vs target box
        sx = jax.nn.sigmoid(pred_ref[1, sl, :].astype(jnp.float32))
        sy = jax.nn.sigmoid(pred_ref[2, sl, :].astype(jnp.float32))
        pw = pred_ref[3, sl, :].astype(jnp.float32)
        ph = pred_ref[4, sl, :].astype(jnp.float32)
        ew = jnp.exp(pw) * anc_w
        eh = jnp.exp(ph) * anc_h

        tx = tgt_ref[1, sl, :].astype(jnp.float32)
        ty = tgt_ref[2, sl, :].astype(jnp.float32)
        tw = tgt_ref[3, sl, :].astype(jnp.float32)
        th = tgt_ref[4, sl, :].astype(jnp.float32)

        iw = jnp.maximum(jnp.minimum(sx + 0.5 * ew, tx + 0.5 * tw)
                         - jnp.maximum(sx - 0.5 * ew, tx - 0.5 * tw), 0.0)
        ih = jnp.maximum(jnp.minimum(sy + 0.5 * eh, ty + 0.5 * th)
                         - jnp.maximum(sy - 0.5 * eh, ty - 0.5 * th), 0.0)
        inter = iw * ih
        union = jnp.abs(ew * eh) + jnp.abs(tw * th) - inter + 1e-6
        # NOTE: approx reciprocal (EUP) -- deliberate deviation, within 1e-3.
        iou = inter * pl.reciprocal(union, approx=True)

        # object BCE: base - x * iou (target = iou inside the obj mask)
        acc_obj = acc_obj + jnp.where(obj_m, bce_base - x * iou, 0.0)

        # box MSE on [sigmoid(x), sigmoid(y), tw, th]
        twl = jnp.log(1e-6 + tw * inv_w)
        thl = jnp.log(1e-6 + th * inv_h)
        mse = ((sx - tx) ** 2 + (sy - ty) ** 2
               + (pw - twl) ** 2 + (ph - thl) ** 2)
        acc_box = acc_box + jnp.where(obj_m, mse, 0.0)

        # class cross-entropy, streamed over class chunks (online logsumexp)
        # TODO(synk): optionally compute the per-chunk exp in bf16 on v6e/v7x
        # (bf16 EUP ~2x rate) once re-validated against the f32 reference.
        cls_id = tgt_ref[5, sl, :].astype(jnp.int32)
        m = None
        s = None
        picked = zeros
        for start in range(0, n_class, _CLASS_CHUNK):
            n = min(_CLASS_CHUNK, n_class - start)
            logits = pred_ref[5 + start:5 + start + n, sl, :].astype(jnp.float32)
            cmax = jnp.max(logits, axis=0)
            if m is None:
                m_new = cmax
                s = jnp.sum(jnp.exp(logits - m_new[None]), axis=0)
            else:
                m_new = jnp.maximum(m, cmax)
                s = (s * jnp.exp(m - m_new)
                     + jnp.sum(jnp.exp(logits - m_new[None]), axis=0))
            iota = lax.broadcasted_iota(jnp.int32, logits.shape, 0) + start
            picked = picked + jnp.sum(
                jnp.where(iota == cls_id[None], logits, 0.0), axis=0)
            m = m_new
        lse = m + jnp.log(s)
        acc_ce = acc_ce + jnp.where(obj_m, lse - picked, 0.0)

        # masked counts
        acc_nobj = acc_nobj + obj_m.astype(jnp.float32)
        acc_nnoobj = acc_nnoobj + noobj_m.astype(jnp.float32)
        return (acc_noobj, acc_obj, acc_box, acc_ce, acc_nobj, acc_nnoobj)

    init = (zeros,) * 6
    if nc == 1:
        accs = chunk(0, init)
    else:
        # vreg pressure is bounded by the streamed class CE, so unrolling is
        # safe and lets EUP work from chunk c+1 overlap VPU math from chunk c.
        accs = lax.fori_loop(0, nc, chunk, init, unroll=2)

    # Fold this step's (gc,128) partials into the resident output block.
    for t in range(6):
        out_ref[t * gc:(t + 1) * gc, :] += accs[t]


def yolo_loss_pallas(predictions, target, anchors, *,
                     input_dtype=jnp.bfloat16, max_block_rows=None):
    """predictions: (N, 3, S, S, 5+C); target: (N, 3, S, S, 6); anchors: (3, 2).

    input_dtype=bf16 halves the kernel's HBM traffic (the op is HBM-bound);
    all arithmetic and accumulators stay f32.  Use input_dtype=jnp.float32
    for bit-closer parity with the PyTorch reference.
    """
    N, A, S1, S2, D = predictions.shape
    C = D - 5
    M = N * S1 * S2
    gc = _GC
    itemsize = jnp.dtype(input_dtype).itemsize

    # ---- per-generation VMEM budgeting (v7x has 64 MiB/TC, v5e/v6e 128 MiB)
    try:
        vmem_cap = int(getattr(pltpu.get_tpu_info(), "vmem_capacity_bytes",
                               64 * 2**20))
    except Exception:  # pragma: no cover - conservative fallback (v7x floor)
        vmem_cap = 64 * 2**20
    input_budget = min(24 * 2**20, vmem_cap // 3)   # double-buffered inputs

    row_pred = 128 * D * itemsize
    row_tgt = 128 * 6 * itemsize
    # ~4 MiB pred block target (review: multi-MB blocks >> 0.35us step overhead)
    gs = max(gc, (4 * 2**20) // row_pred // gc * gc)
    gs_cap = max(gc, input_budget // (2 * (row_pred + row_tgt)) // gc * gc)
    gs = min(gs, gs_cap)
    if max_block_rows is not None:
        gs = max(gc, min(gs, max_block_rows // gc * gc))

    G = -(-M // 128)                    # 128-cell sublane rows per anchor
    G8 = -(-G // gc) * gc
    gs = min(gs, G8)
    nb = -(-G8 // gs)                   # cell blocks per anchor
    # Megacore balance: split cell blocks 1:1 over a leading parallel axis.
    P = 2 if nb >= 2 else 1
    nb = -(-nb // P) * P
    n_i = nb // P
    Gp = nb * gs
    Mp = Gp * 128

    # Lane-dense relayout (anchor, feature, row-of-128-cells, 128); the
    # f32->bf16 cast and the pad fuse into this one unavoidable relayout copy.
    # TODO(synk): if the producing head can emit channels-first (A, D, cells),
    # this transpose (a full HBM read+write) can be dropped entirely.
    pred_t = jnp.transpose(predictions.astype(input_dtype),
                           (1, 4, 0, 2, 3)).reshape(A, D, M)
    tgt_t = jnp.transpose(target.astype(input_dtype),
                          (1, 4, 0, 2, 3)).reshape(A, 6, M)
    if Mp != M:
        pred_t = jnp.pad(pred_t, ((0, 0), (0, 0), (0, Mp - M)))
        # Pad target with -1.0: padded cells match neither obj nor noobj, so
        # no per-chunk validity mask is needed in the kernel.
        tgt_t = jnp.pad(tgt_t, ((0, 0), (0, 0), (0, Mp - M)),
                        constant_values=-1.0)
    pred4 = pred_t.reshape(A, D, Gp, 128)
    tgt4 = tgt_t.reshape(A, 6, Gp, 128)

    # Anchors + reciprocals as SMEM scalars: (A, 4) = [w, h, 1/w, 1/h].
    anc = anchors.astype(jnp.float32).reshape(A, 2)
    anc_smem = jnp.concatenate([anc, 1.0 / anc], axis=1)

    # Deeper buffering only as a fallback for genuinely tiny blocks.
    pred_block_bytes = gs * row_pred
    tgt_block_bytes = gs * row_tgt
    use_deep_buffer = pred_block_bytes < (1 << 20) and n_i >= 2

    def _in_spec(feat):
        kwargs = {}
        if use_deep_buffer:
            kwargs["pipeline_mode"] = pl.Buffered(3)
        return pl.BlockSpec((None, feat, gs, 128),
                            lambda p, a, i: (a, 0, p * n_i + i, 0), **kwargs)

    vmem_limit = int(min(vmem_cap * 3 // 4,
                         max(32 * 2**20,
                             3 * (pred_block_bytes + tgt_block_bytes)
                             + (8 << 20))))

    kernel = functools.partial(_yolo_loss_kernel, n_class=C)

    out = pl.pallas_call(
        kernel,
        out_shape=jax.ShapeDtypeStruct((P, A, 6 * gc, 128), jnp.float32),
        grid_spec=pltpu.PrefetchScalarGridSpec(
            num_scalar_prefetch=0,
            grid=(P, A, n_i),
            in_specs=[
                pl.BlockSpec(memory_space=pltpu.MemorySpace.SMEM),
                _in_spec(D),
                _in_spec(6),
            ],
            out_specs=pl.BlockSpec((None, None, 6 * gc, 128),
                                   lambda p, a, i: (p, a, 0, 0)),
        ),
        compiler_params=pltpu.CompilerParams(
            dimension_semantics=("parallel", "arbitrary", "arbitrary"),
            vmem_limit_bytes=vmem_limit),
    )(anc_smem, pred4, tgt4)

    # Tiny final combine (masked means) in plain JAX.
    sums = jnp.sum(out.reshape(P * A, 6, gc, 128), axis=(0, 2, 3))   # (6,)
    noobj_sum, obj_sum, box_sum, ce_sum = sums[0], sums[1], sums[2], sums[3]
    n_obj, n_noobj = sums[4], sums[5]
    # TODO(synk): matches PyTorch semantics exactly, incl. NaN if n_obj==0 or
    # n_noobj==0 (mean over an empty selection).
    box_loss = box_sum / (4.0 * n_obj)
    object_loss = obj_sum / n_obj
    no_object_loss = noobj_sum / n_noobj
    class_loss = ce_sum / n_obj
    return (LAMBDA_BOX * box_loss + LAMBDA_OBJ * object_loss
            + LAMBDA_NOOBJ * no_object_loss + LAMBDA_CLASS * class_loss)


def yolo_loss_ref(predictions, target, anchors):
    """Pure-JAX f32 reference with masked means (matches PyTorch indexing)."""
    pred = predictions.astype(jnp.float32)
    tgt = target.astype(jnp.float32)
    anc = anchors.reshape(1, 3, 1, 1, 2).astype(jnp.float32)

    obj = (tgt[..., 0:1] == 1.0).astype(jnp.float32)
    noobj = (tgt[..., 0:1] == 0.0).astype(jnp.float32)
    n_obj = jnp.sum(obj)
    n_noobj = jnp.sum(noobj)

    bce = _bce_with_logits
    no_object_loss = jnp.sum(bce(pred[..., 0:1], jnp.zeros_like(pred[..., 0:1]))
                             * noobj) / n_noobj

    sig_xy = jax.nn.sigmoid(pred[..., 1:3])
    exp_wh = jnp.exp(pred[..., 3:5]) * anc
    b1x1 = sig_xy[..., 0:1] - exp_wh[..., 0:1] / 2
    b1y1 = sig_xy[..., 1:2] - exp_wh[..., 1:2] / 2
    b1x2 = sig_xy[..., 0:1] + exp_wh[..., 0:1] / 2
    b1y2 = sig_xy[..., 1:2] + exp_wh[..., 1:2] / 2
    b2x1 = tgt[..., 1:2] - tgt[..., 3:4] / 2
    b2y1 = tgt[..., 2:3] - tgt[..., 4:5] / 2
    b2x2 = tgt[..., 1:2] + tgt[..., 3:4] / 2
    b2y2 = tgt[..., 2:3] + tgt[..., 4:5] / 2
    inter = (jnp.maximum(jnp.minimum(b1x2, b2x2) - jnp.maximum(b1x1, b2x1), 0.0)
             * jnp.maximum(jnp.minimum(b1y2, b2y2) - jnp.maximum(b1y1, b2y1), 0.0))
    a1 = jnp.abs((b1x2 - b1x1) * (b1y2 - b1y1))
    a2 = jnp.abs((b2x2 - b2x1) * (b2y2 - b2y1))
    iou = inter / (a1 + a2 - inter + 1e-6)

    object_loss = jnp.sum(bce(pred[..., 0:1], iou * tgt[..., 0:1]) * obj) / n_obj

    tgt_wh_log = jnp.log(1e-6 + tgt[..., 3:5] / anc)
    mse = (jnp.sum((sig_xy - tgt[..., 1:3]) ** 2 * obj)
           + jnp.sum((pred[..., 3:5] - tgt_wh_log) ** 2 * obj))
    box_loss = mse / (4.0 * n_obj)

    logits = pred[..., 5:]
    lse = jax.nn.logsumexp(logits, axis=-1, keepdims=True)
    cls_id = tgt[..., 5:6].astype(jnp.int32)
    picked = jnp.take_along_axis(logits, cls_id, axis=-1)
    class_loss = jnp.sum((lse - picked) * obj) / n_obj

    return (LAMBDA_BOX * box_loss + LAMBDA_OBJ * object_loss
            + LAMBDA_NOOBJ * no_object_loss + LAMBDA_CLASS * class_loss)


def _make_inputs(key, N, A, S, C):
    k1, k2, k3, k4, k5, k6 = jax.random.split(key, 6)
    D = 5 + C
    predictions = jax.random.normal(k1, (N, A, S, S, D), dtype=jnp.float32)
    obj_flag = jax.random.bernoulli(k2, 0.3, (N, A, S, S, 1)).astype(jnp.float32)
    xy = jax.random.uniform(k3, (N, A, S, S, 2), minval=0.0, maxval=1.0)
    wh = jax.random.uniform(k4, (N, A, S, S, 2), minval=0.1, maxval=2.0)
    cls = jax.random.randint(k5, (N, A, S, S, 1), 0, C).astype(jnp.float32)
    target = jnp.concatenate([obj_flag, xy, wh, cls], axis=-1)   # (N,3,S,S,6)
    anchors = jax.random.uniform(k6, (A, 2), minval=0.5, maxval=2.0)
    return predictions, target, anchors


if __name__ == "__main__":
    key = jax.random.PRNGKey(0)
    k_a, k_b = jax.random.split(key)

    # 1) Small YOLO head, exact-f32 input path vs reference (strict).
    preds, tgt, anchors = _make_inputs(k_a, N=2, A=3, S=8, C=8)
    loss_f32 = jax.block_until_ready(
        yolo_loss_pallas(preds, tgt, anchors, input_dtype=jnp.float32))
    ref = yolo_loss_ref(preds, tgt, anchors)
    assert jnp.allclose(loss_f32, ref, rtol=1e-3, atol=1e-3), (loss_f32, ref)

    # 2) Default bf16-input fast path (inputs quantized to bf16 in the
    #    relayout; arithmetic stays f32) -- looser tolerance vs f32 reference.
    loss_bf16 = jax.block_until_ready(yolo_loss_pallas(preds, tgt, anchors))
    assert jnp.allclose(loss_bf16, ref, rtol=3e-2, atol=3e-2), (loss_bf16, ref)

    # 3) Ragged config exercising the balanced 2-way parallel split, the
    #    streamed class-CE remainder (C=11), sentinel padding across blocks
    #    and the deep-buffered small-block fallback.
    preds2, tgt2, anchors2 = _make_inputs(k_b, N=16, A=3, S=13, C=11)
    ref2 = yolo_loss_ref(preds2, tgt2, anchors2)
    loss2 = jax.block_until_ready(
        yolo_loss_pallas(preds2, tgt2, anchors2, input_dtype=jnp.float32,
                         max_block_rows=8))
    assert jnp.allclose(loss2, ref2, rtol=1e-3, atol=1e-3), (loss2, ref2)

    # 4) Same data, bf16 inputs with 16-row blocks -> exercises the unrolled
    #    in-kernel chunk loop and bf16 sublane-chunk slicing.
    loss3 = jax.block_until_ready(
        yolo_loss_pallas(preds2, tgt2, anchors2, max_block_rows=16))
    assert jnp.allclose(loss3, ref2, rtol=3e-2, atol=3e-2), (loss3, ref2)

    print("KERNEL_OK")
</pallas_src>

<mosaic_0001>
module attributes {stable_mosaic.version = 11 : i64} {
  func.func @_yolo_loss_kernel(%arg0: i32, %arg1: i32, %arg2: i32, %arg3: memref<3x4xf32, #tpu.memory_space<smem>>, %arg4: memref<1x13x8x128xf32, #tpu.memory_space<vmem>>, %arg5: memref<1x6x8x128xf32, #tpu.memory_space<vmem>>, %arg6: memref<1x1x48x128xf32, #tpu.memory_space<vmem>>) attributes {dimension_semantics = [#tpu.dimension_semantics<parallel>, #tpu.dimension_semantics<arbitrary>, #tpu.dimension_semantics<arbitrary>], iteration_bounds = array<i64: 1, 3, 1>, scalar_prefetch = 0 : i64, scratch_operands = 0 : i64, tpu.core_type = #tpu.core_type<tc>, window_params = [{transform_indices = @transform_0, window_bounds = array<i64: 3, 4>}, {transform_indices = @transform_1, window_bounds = array<i64: 1, 13, 8, 128>}, {transform_indices = @transform_2, window_bounds = array<i64: 1, 6, 8, 128>}, {transform_indices = @transform_3, window_bounds = array<i64: 1, 1, 48, 128>}]} {
    %c0_i32 = arith.constant 0 : i32
    %0 = arith.cmpi eq, %arg2, %c0_i32 : i32
    %1 = arith.extui %0 : i1 to i32
    %c0_i32_0 = arith.constant 0 : i32
    %2 = arith.cmpi ne, %1, %c0_i32_0 : i32
    scf.if %2 {
      %cst_118 = arith.constant 0.000000e+00 : f32
      %206 = vector.broadcast %cst_118 : f32 to vector<48x128xf32>
      %c0_119 = arith.constant 0 : index
      %c0_120 = arith.constant 0 : index
      %c0_121 = arith.constant 0 : index
      %c0_122 = arith.constant 0 : index
      %207 = vector.load %arg6[%c0_119, %c0_120, %c0_121, %c0_122] : memref<1x1x48x128xf32, #tpu.memory_space<vmem>>, vector<1x1x48x128xf32>
      %208 = vector.shape_cast %207 : vector<1x1x48x128xf32> to vector<48x128xf32>
      %209 = vector.shape_cast %206 : vector<48x128xf32> to vector<1x1x48x128xf32>
      tpu.vector_store %arg6[%c0_119, %c0_120, %c0_121, %c0_122], %209 {strides = array<i32>} : memref<1x1x48x128xf32, #tpu.memory_space<vmem>>, vector<1x1x48x128xf32>,
    } else {
    }
    %3 = arith.index_cast %arg1 : i32 to index
    %c0 = arith.constant 0 : index
    %4 = memref.load %arg3[%3, %c0] : memref<3x4xf32, #tpu.memory_space<smem>>
    %5 = arith.index_cast %arg1 : i32 to index
    %c1 = arith.constant 1 : index
    %6 = memref.load %arg3[%5, %c1] : memref<3x4xf32, #tpu.memory_space<smem>>
    %7 = arith.index_cast %arg1 : i32 to index
    %c2 = arith.constant 2 : index
    %8 = memref.load %arg3[%7, %c2] : memref<3x4xf32, #tpu.memory_space<smem>>
    %9 = arith.index_cast %arg1 : i32 to index
    %c3 = arith.constant 3 : index
    %10 = memref.load %arg3[%9, %c3] : memref<3x4xf32, #tpu.memory_space<smem>>
    %cst = arith.constant 0.000000e+00 : f32
    %11 = vector.broadcast %cst : f32 to vector<8x128xf32>
    %c0_1 = arith.constant 0 : index
    %c0_2 = arith.constant 0 : index
    %c0_3 = arith.constant 0 : index
    %c0_4 = arith.constant 0 : index
    %12 = vector.load %arg5[%c0_1, %c0_2, %c0_3, %c0_4] : memref<1x6x8x128xf32, #tpu.memory_space<vmem>>, vector<1x1x8x128xf32>
    %13 = vector.shape_cast %12 : vector<1x1x8x128xf32> to vector<8x128xf32>
    %cst_5 = arith.constant 1.000000e+00 : f32
    %14 = vector.broadcast %cst_5 : f32 to vector<8x128xf32>
    %15 = arith.cmpf oeq, %13, %14 : vector<8x128xf32>
    %cst_6 = arith.constant 0.000000e+00 : f32
    %16 = vector.broadcast %cst_6 : f32 to vector<8x128xf32>
    %17 = arith.cmpf oeq, %13, %16 : vector<8x128xf32>
    %c0_7 = arith.constant 0 : index
    %c0_8 = arith.constant 0 : index
    %c0_9 = arith.constant 0 : index
    %c0_10 = arith.constant 0 : index
    %18 = vector.load %arg4[%c0_7, %c0_8, %c0_9, %c0_10] : memref<1x13x8x128xf32, #tpu.memory_space<vmem>>, vector<1x1x8x128xf32>
    %19 = vector.shape_cast %18 : vector<1x1x8x128xf32> to vector<8x128xf32>
    %cst_11 = arith.constant 0.000000e+00 : f32
    %20 = vector.broadcast %cst_11 : f32 to vector<8x128xf32>
    %21 = arith.maximumf %19, %20 : vector<8x128xf32>
    %22 = math.absf %19 : vector<8x128xf32>
    %cst_12 = arith.constant 0.000000e+00 : f32
    %23 = vector.broadcast %cst_12 : f32 to vector<8x128xf32>
    %24 = arith.subf %23, %22 : vector<8x128xf32>
    %25 = math.exp %24 : vector<8x128xf32>
    %26 = math.log1p %25 : vector<8x128xf32>
    %27 = arith.addf %21, %26 : vector<8x128xf32>
    %cst_13 = arith.constant 0.000000e+00 : f32
    %28 = vector.broadcast %cst_13 : f32 to vector<8x128xf32>
    %29 = arith.select %17, %27, %28 : vector<8x128xi1>, vector<8x128xf32>
    %30 = arith.addf %11, %29 : vector<8x128xf32>
    %c0_14 = arith.constant 0 : index
    %c1_15 = arith.constant 1 : index
    %c0_16 = arith.constant 0 : index
    %c0_17 = arith.constant 0 : index
    %31 = vector.load %arg4[%c0_14, %c1_15, %c0_16, %c0_17] : memref<1x13x8x128xf32, #tpu.memory_space<vmem>>, vector<1x1x8x128xf32>
    %32 = vector.shape_cast %31 : vector<1x1x8x128xf32> to vector<8x128xf32>
    %33 = arith.negf %32 : vector<8x128xf32>
    %34 = math.exp %33 : vector<8x128xf32>
    %cst_18 = arith.constant 1.000000e+00 : f32
    %35 = vector.broadcast %cst_18 : f32 to vector<8x128xf32>
    %36 = arith.addf %35, %34 : vector<8x128xf32>
    %37 = arith.divf %35, %36 : vector<8x128xf32>
    %c0_19 = arith.constant 0 : index
    %c2_20 = arith.constant 2 : index
    %c0_21 = arith.constant 0 : index
    %c0_22 = arith.constant 0 : index
    %38 = vector.load %arg4[%c0_19, %c2_20, %c0_21, %c0_22] : memref<1x13x8x128xf32, #tpu.memory_space<vmem>>, vector<1x1x8x128xf32>
    %39 = vector.shape_cast %38 : vector<1x1x8x128xf32> to vector<8x128xf32>
    %40 = arith.negf %39 : vector<8x128xf32>
    %41 = math.exp %40 : vector<8x128xf32>
    %cst_23 = arith.constant 1.000000e+00 : f32
    %42 = vector.broadcast %cst_23 : f32 to vector<8x128xf32>
    %43 = arith.addf %42, %41 : vector<8x128xf32>
    %44 = arith.divf %42, %43 : vector<8x128xf32>
    %c0_24 = arith.constant 0 : index
    %c3_25 = arith.constant 3 : index
    %c0_26 = arith.constant 0 : index
    %c0_27 = arith.constant 0 : index
    %45 = vector.load %arg4[%c0_24, %c3_25, %c0_26, %c0_27] : memref<1x13x8x128xf32, #tpu.memory_space<vmem>>, vector<1x1x8x128xf32>
    %46 = vector.shape_cast %45 : vector<1x1x8x128xf32> to vector<8x128xf32>
    %c0_28 = arith.constant 0 : index
    %c4 = arith.constant 4 : index
    %c0_29 = arith.constant 0 : index
    %c0_30 = arith.constant 0 : index
    %47 = vector.load %arg4[%c0_28, %c4, %c0_29, %c0_30] : memref<1x13x8x128xf32, #tpu.memory_space<vmem>>, vector<1x1x8x128xf32>
    %48 = vector.shape_cast %47 : vector<1x1x8x128xf32> to vector<8x128xf32>
    %49 = math.exp %46 : vector<8x128xf32>
    %50 = vector.broadcast %4 : f32 to vector<8x128xf32>
    %51 = arith.mulf %49, %50 : vector<8x128xf32>
    %52 = math.exp %48 : vector<8x128xf32>
    %53 = vector.broadcast %6 : f32 to vector<8x128xf32>
    %54 = arith.mulf %52, %53 : vector<8x128xf32>
    %c0_31 = arith.constant 0 : index
    %c1_32 = arith.constant 1 : index
    %c0_33 = arith.constant 0 : index
    %c0_34 = arith.constant 0 : index
    %55 = vector.load %arg5[%c0_31, %c1_32, %c0_33, %c0_34] : memref<1x6x8x128xf32, #tpu.memory_space<vmem>>, vector<1x1x8x128xf32>
    %56 = vector.shape_cast %55 : vector<1x1x8x128xf32> to vector<8x128xf32>
    %c0_35 = arith.constant 0 : index
    %c2_36 = arith.constant 2 : index
    %c0_37 = arith.constant 0 : index
    %c0_38 = arith.constant 0 : index
    %57 = vector.load %arg5[%c0_35, %c2_36, %c0_37, %c0_38] : memref<1x6x8x128xf32, #tpu.memory_space<vmem>>, vector<1x1x8x128xf32>
    %58 = vector.shape_cast %57 : vector<1x1x8x128xf32> to vector<8x128xf32>
    %c0_39 = arith.constant 0 : index
    %c3_40 = arith.constant 3 : index
    %c0_41 = arith.constant 0 : index
    %c0_42 = arith.constant 0 : index
    %59 = vector.load %arg5[%c0_39, %c3_40, %c0_41, %c0_42] : memref<1x6x8x128xf32, #tpu.memory_space<vmem>>, vector<1x1x8x128xf32>
    %60 = vector.shape_cast %59 : vector<1x1x8x128xf32> to vector<8x128xf32>
    %c0_43 = arith.constant 0 : index
    %c4_44 = arith.constant 4 : index
    %c0_45 = arith.constant 0 : index
    %c0_46 = arith.constant 0 : index
    %61 = vector.load %arg5[%c0_43, %c4_44, %c0_45, %c0_46] : memref<1x6x8x128xf32, #tpu.memory_space<vmem>>, vector<1x1x8x128xf32>
    %62 = vector.shape_cast %61 : vector<1x1x8x128xf32> to vector<8x128xf32>
    %cst_47 = arith.constant 5.000000e-01 : f32
    %63 = vector.broadcast %cst_47 : f32 to vector<8x128xf32>
    %64 = arith.mulf %63, %51 : vector<8x128xf32>
    %65 = arith.addf %37, %64 : vector<8x128xf32>
    %cst_48 = arith.constant 5.000000e-01 : f32
    %66 = vector.broadcast %cst_48 : f32 to vector<8x128xf32>
    %67 = arith.mulf %66, %60 : vector<8x128xf32>
    %68 = arith.addf %56, %67 : vector<8x128xf32>
    %69 = arith.minimumf %65, %68 : vector<8x128xf32>
    %cst_49 = arith.constant 5.000000e-01 : f32
    %70 = vector.broadcast %cst_49 : f32 to vector<8x128xf32>
    %71 = arith.mulf %70, %51 : vector<8x128xf32>
    %72 = arith.subf %37, %71 : vector<8x128xf32>
    %cst_50 = arith.constant 5.000000e-01 : f32
    %73 = vector.broadcast %cst_50 : f32 to vector<8x128xf32>
    %74 = arith.mulf %73, %60 : vector<8x128xf32>
    %75 = arith.subf %56, %74 : vector<8x128xf32>
    %76 = arith.maximumf %72, %75 : vector<8x128xf32>
    %77 = arith.subf %69, %76 : vector<8x128xf32>
    %cst_51 = arith.constant 0.000000e+00 : f32
    %78 = vector.broadcast %cst_51 : f32 to vector<8x128xf32>
    %79 = arith.maximumf %77, %78 : vector<8x128xf32>
    %cst_52 = arith.constant 5.000000e-01 : f32
    %80 = vector.broadcast %cst_52 : f32 to vector<8x128xf32>
    %81 = arith.mulf %80, %54 : vector<8x128xf32>
    %82 = arith.addf %44, %81 : vector<8x128xf32>
    %cst_53 = arith.constant 5.000000e-01 : f32
    %83 = vector.broadcast %cst_53 : f32 to vector<8x128xf32>
    %84 = arith.mulf %83, %62 : vector<8x128xf32>
    %85 = arith.addf %58, %84 : vector<8x128xf32>
    %86 = arith.minimumf %82, %85 : vector<8x128xf32>
    %cst_54 = arith.constant 5.000000e-01 : f32
    %87 = vector.broadcast %cst_54 : f32 to vector<8x128xf32>
    %88 = arith.mulf %87, %54 : vector<8x128xf32>
    %89 = arith.subf %44, %88 : vector<8x128xf32>
    %cst_55 = arith.constant 5.000000e-01 : f32
    %90 = vector.broadcast %cst_55 : f32 to vector<8x128xf32>
    %91 = arith.mulf %90, %62 : vector<8x128xf32>
    %92 = arith.subf %58, %91 : vector<8x128xf32>
    %93 = arith.maximumf %89, %92 : vector<8x128xf32>
    %94 = arith.subf %86, %93 : vector<8x128xf32>
    %cst_56 = arith.constant 0.000000e+00 : f32
    %95 = vector.broadcast %cst_56 : f32 to vector<8x128xf32>
    %96 = arith.maximumf %94, %95 : vector<8x128xf32>
    %97 = arith.mulf %79, %96 : vector<8x128xf32>
    %98 = arith.mulf %51, %54 : vector<8x128xf32>
    %99 = math.absf %98 : vector<8x128xf32>
    %100 = arith.mulf %60, %62 : vector<8x128xf32>
    %101 = math.absf %100 : vector<8x128xf32>
    %102 = arith.addf %99, %101 : vector<8x128xf32>
    %103 = arith.subf %102, %97 : vector<8x128xf32>
    %cst_57 = arith.constant 9.99999997E-7 : f32
    %104 = vector.broadcast %cst_57 : f32 to vector<8x128xf32>
    %105 = arith.addf %103, %104 : vector<8x128xf32>
    %106 = tpu.reciprocal %105 {approx = true} : vector<8x128xf32> -> vector<8x128xf32>
    %107 = arith.mulf %97, %106 : vector<8x128xf32>
    %108 = arith.mulf %19, %107 : vector<8x128xf32>
    %109 = arith.subf %27, %108 : vector<8x128xf32>
    %cst_58 = arith.constant 0.000000e+00 : f32
    %110 = vector.broadcast %cst_58 : f32 to vector<8x128xf32>
    %111 = arith.select %15, %109, %110 : vector<8x128xi1>, vector<8x128xf32>
    %112 = arith.addf %11, %111 : vector<8x128xf32>
    %113 = vector.broadcast %8 : f32 to vector<8x128xf32>
    %114 = arith.mulf %60, %113 : vector<8x128xf32>
    %cst_59 = arith.constant 9.99999997E-7 : f32
    %115 = vector.broadcast %cst_59 : f32 to vector<8x128xf32>
    %116 = arith.addf %115, %114 : vector<8x128xf32>
    %117 = math.log %116 : vector<8x128xf32>
    %118 = vector.broadcast %10 : f32 to vector<8x128xf32>
    %119 = arith.mulf %62, %118 : vector<8x128xf32>
    %cst_60 = arith.constant 9.99999997E-7 : f32
    %120 = vector.broadcast %cst_60 : f32 to vector<8x128xf32>
    %121 = arith.addf %120, %119 : vector<8x128xf32>
    %122 = math.log %121 : vector<8x128xf32>
    %123 = arith.subf %37, %56 : vector<8x128xf32>
    %124 = arith.mulf %123, %123 : vector<8x128xf32>
    %125 = arith.subf %44, %58 : vector<8x128xf32>
    %126 = arith.mulf %125, %125 : vector<8x128xf32>
    %127 = arith.addf %124, %126 : vector<8x128xf32>
    %128 = arith.subf %46, %117 : vector<8x128xf32>
    %129 = arith.mulf %128, %128 : vector<8x128xf32>
    %130 = arith.addf %127, %129 : vector<8x128xf32>
    %131 = arith.subf %48, %122 : vector<8x128xf32>
    %132 = arith.mulf %131, %131 : vector<8x128xf32>
    %133 = arith.addf %130, %132 : vector<8x128xf32>
    %cst_61 = arith.constant 0.000000e+00 : f32
    %134 = vector.broadcast %cst_61 : f32 to vector<8x128xf32>
    %135 = arith.select %15, %133, %134 : vector<8x128xi1>, vector<8x128xf32>
    %136 = arith.addf %11, %135 : vector<8x128xf32>
    %c0_62 = arith.constant 0 : index
    %c5 = arith.constant 5 : index
    %c0_63 = arith.constant 0 : index
    %c0_64 = arith.constant 0 : index
    %137 = vector.load %arg5[%c0_62, %c5, %c0_63, %c0_64] : memref<1x6x8x128xf32, #tpu.memory_space<vmem>>, vector<1x1x8x128xf32>
    %138 = vector.shape_cast %137 : vector<1x1x8x128xf32> to vector<8x128xf32>
    %139 = arith.fptosi %138 : vector<8x128xf32> to vector<8x128xi32>
    %c0_65 = arith.constant 0 : index
    %c5_66 = arith.constant 5 : index
    %c0_67 = arith.constant 0 : index
    %c0_68 = arith.constant 0 : index
    %140 = vector.load %arg4[%c0_65, %c5_66, %c0_67, %c0_68] : memref<1x13x8x128xf32, #tpu.memory_space<vmem>>, vector<1x8x8x128xf32>
    %141 = vector.shape_cast %140 : vector<1x8x8x128xf32> to vector<8x8x128xf32>
    %cst_69 = arith.constant dense<0xFF800000> : vector<8x128xf32>
    %142 = vector.multi_reduction <maximumf>, %141, %cst_69 [0] : vector<8x8x128xf32> to vector<8x128xf32>
    %143 = vector.shape_cast %142 : vector<8x128xf32> to vector<1x8x128xf32>
    %144 = vector.broadcast %143 : vector<1x8x128xf32> to vector<8x8x128xf32>
    %145 = arith.subf %141, %144 : vector<8x8x128xf32>
    %146 = math.exp %145 : vector<8x8x128xf32>
    %cst_70 = arith.constant dense<0.000000e+00> : vector<8x128xf32>
    %147 = vector.multi_reduction <add>, %146, %cst_70 [0] : vector<8x8x128xf32> to vector<8x128xf32>
    %148 = tpu.iota {dimensions = array<i32: 0>} : vector<8x8x128xi32>
    %c0_i32_71 = arith.constant 0 : i32
    %149 = vector.broadcast %c0_i32_71 : i32 to vector<8x8x128xi32>
    %150 = arith.addi %148, %149 : vector<8x8x128xi32>
    %151 = vector.shape_cast %139 : vector<8x128xi32> to vector<1x8x128xi32>
    %152 = vector.broadcast %151 : vector<1x8x128xi32> to vector<8x8x128xi32>
    %153 = arith.cmpi eq, %150, %152 : vector<8x8x128xi32>
    %cst_72 = arith.constant 0.000000e+00 : f32
    %154 = vector.broadcast %cst_72 : f32 to vector<8x8x128xf32>
    %155 = arith.select %153, %141, %154 : vector<8x8x128xi1>, vector<8x8x128xf32>
    %cst_73 = arith.constant dense<0.000000e+00> : vector<8x128xf32>
    %156 = vector.multi_reduction <add>, %155, %cst_73 [0] : vector<8x8x128xf32> to vector<8x128xf32>
    %157 = arith.addf %11, %156 : vector<8x128xf32>
    %158 = math.log %147 : vector<8x128xf32>
    %159 = arith.addf %142, %158 : vector<8x128xf32>
    %160 = arith.subf %159, %157 : vector<8x128xf32>
    %cst_74 = arith.constant 0.000000e+00 : f32
    %161 = vector.broadcast %cst_74 : f32 to vector<8x128xf32>
    %162 = arith.select %15, %160, %161 : vector<8x128xi1>, vector<8x128xf32>
    %163 = arith.addf %11, %162 : vector<8x128xf32>
    %164 = arith.extui %15 : vector<8x128xi1> to vector<8x128xi32>
    %165 = arith.sitofp %164 : vector<8x128xi32> to vector<8x128xf32>
    %166 = arith.addf %11, %165 : vector<8x128xf32>
    %167 = arith.extui %17 : vector<8x128xi1> to vector<8x128xi32>
    %168 = arith.sitofp %167 : vector<8x128xi32> to vector<8x128xf32>
    %169 = arith.addf %11, %168 : vector<8x128xf32>
    %c0_75 = arith.constant 0 : index
    %c0_76 = arith.constant 0 : index
    %c0_77 = arith.constant 0 : index
    %c0_78 = arith.constant 0 : index
    %170 = vector.load %arg6[%c0_75, %c0_76, %c0_77, %c0_78] : memref<1x1x48x128xf32, #tpu.memory_space<vmem>>, vector<1x1x8x128xf32>
    %171 = vector.shape_cast %170 : vector<1x1x8x128xf32> to vector<8x128xf32>
    %172 = arith.addf %171, %30 : vector<8x128xf32>
    %c0_79 = arith.constant 0 : index
    %c0_80 = arith.constant 0 : index
    %c0_81 = arith.constant 0 : index
    %c0_82 = arith.constant 0 : index
    %173 = vector.load %arg6[%c0_79, %c0_80, %c0_81, %c0_82] : memref<1x1x48x128xf32, #tpu.memory_space<vmem>>, vector<1x1x8x128xf32>
    %174 = vector.shape_cast %173 : vector<1x1x8x128xf32> to vector<8x128xf32>
    %175 = vector.shape_cast %172 : vector<8x128xf32> to vector<1x1x8x128xf32>
    tpu.vector_store %arg6[%c0_79, %c0_80, %c0_81, %c0_82], %175 {strides = array<i32>} : memref<1x1x48x128xf32, #tpu.memory_space<vmem>>, vector<1x1x8x128xf32>,
    %c0_83 = arith.constant 0 : index
    %c0_84 = arith.constant 0 : index
    %c8 = arith.constant 8 : index
    %c0_85 = arith.constant 0 : index
    %176 = vector.load %arg6[%c0_83, %c0_84, %c8, %c0_85] : memref<1x1x48x128xf32, #tpu.memory_space<vmem>>, vector<1x1x8x128xf32>
    %177 = vector.shape_cast %176 : vector<1x1x8x128xf32> to vector<8x128xf32>
    %178 = arith.addf %177, %112 : vector<8x128xf32>
    %c0_86 = arith.constant 0 : index
    %c0_87 = arith.constant 0 : index
    %c8_88 = arith.constant 8 : index
    %c0_89 = arith.constant 0 : index
    %179 = vector.load %arg6[%c0_86, %c0_87, %c8_88, %c0_89] : memref<1x1x48x128xf32, #tpu.memory_space<vmem>>, vector<1x1x8x128xf32>
    %180 = vector.shape_cast %179 : vector<1x1x8x128xf32> to vector<8x128xf32>
    %181 = vector.shape_cast %178 : vector<8x128xf32> to vector<1x1x8x128xf32>
    tpu.vector_store %arg6[%c0_86, %c0_87, %c8_88, %c0_89], %181 {strides = array<i32>} : memref<1x1x48x128xf32, #tpu.memory_space<vmem>>, vector<1x1x8x128xf32>,
    %c0_90 = arith.constant 0 : index
    %c0_91 = arith.constant 0 : index
    %c16 = arith.constant 16 : index
    %c0_92 = arith.constant 0 : index
    %182 = vector.load %arg6[%c0_90, %c0_91, %c16, %c0_92] : memref<1x1x48x128xf32, #tpu.memory_space<vmem>>, vector<1x1x8x128xf32>
    %183 = vector.shape_cast %182 : vector<1x1x8x128xf32> to vector<8x128xf32>
    %184 = arith.addf %183, %136 : vector<8x128xf32>
    %c0_93 = arith.constant 0 : index
    %c0_94 = arith.constant 0 : index
    %c16_95 = arith.constant 16 : index
    %c0_96 = arith.constant 0 : index
    %185 = vector.load %arg6[%c0_93, %c0_94, %c16_95, %c0_96] : memref<1x1x48x128xf32, #tpu.memory_space<vmem>>, vector<1x1x8x128xf32>
    %186 = vector.shape_cast %185 : vector<1x1x8x128xf32> to vector<8x128xf32>
    %187 = vector.shape_cast %184 : vector<8x128xf32> to vector<1x1x8x128xf32>
    tpu.vector_store %arg6[%c0_93, %c0_94, %c16_95, %c0_96], %187 {strides = array<i32>} : memref<1x1x48x128xf32, #tpu.memory_space<vmem>>, vector<1x1x8x128xf32>,
    %c0_97 = arith.constant 0 : index
    %c0_98 = arith.constant 0 : index
    %c24 = arith.constant 24 : index
    %c0_99 = arith.constant 0 : index
    %188 = vector.load %arg6[%c0_97, %c0_98, %c24, %c0_99] : memref<1x1x48x128xf32, #tpu.memory_space<vmem>>, vector<1x1x8x128xf32>
    %189 = vector.shape_cast %188 : vector<1x1x8x128xf32> to vector<8x128xf32>
    %190 = arith.addf %189, %163 : vector<8x128xf32>
    %c0_100 = arith.constant 0 : index
    %c0_101 = arith.constant 0 : index
    %c24_102 = arith.constant 24 : index
    %c0_103 = arith.constant 0 : index
    %191 = vector.load %arg6[%c0_100, %c0_101, %c24_102, %c0_103] : memref<1x1x48x128xf32, #tpu.memory_space<vmem>>, vector<1x1x8x128xf32>
    %192 = vector.shape_cast %191 : vector<1x1x8x128xf32> to vector<8x128xf32>
    %193 = vector.shape_cast %190 : vector<8x128xf32> to vector<1x1x8x128xf32>
    tpu.vector_store %arg6[%c0_100, %c0_101, %c24_102, %c0_103], %193 {strides = array<i32>} : memref<1x1x48x128xf32, #tpu.memory_space<vmem>>, vector<1x1x8x128xf32>,
    %c0_104 = arith.constant 0 : index
    %c0_105 = arith.constant 0 : index
    %c32 = arith.constant 32 : index
    %c0_106 = arith.constant 0 : index
    %194 = vector.load %arg6[%c0_104, %c0_105, %c32, %c0_106] : memref<1x1x48x128xf32, #tpu.memory_space<vmem>>, vector<1x1x8x128xf32>
    %195 = vector.shape_cast %194 : vector<1x1x8x128xf32> to vector<8x128xf32>
    %196 = arith.addf %195, %166 : vector<8x128xf32>
    %c0_107 = arith.constant 0 : index
    %c0_108 = arith.constant 0 : index
    %c32_109 = arith.constant 32 : index
    %c0_110 = arith.constant 0 : index
    %197 = vector.load %arg6[%c0_107, %c0_108, %c32_109, %c0_110] : memref<1x1x48x128xf32, #tpu.memory_space<vmem>>, vector<1x1x8x128xf32>
    %198 = vector.shape_cast %197 : vector<1x1x8x128xf32> to vector<8x128xf32>
    %199 = vector.shape_cast %196 : vector<8x128xf32> to vector<1x1x8x128xf32>
    tpu.vector_store %arg6[%c0_107, %c0_108, %c32_109, %c0_110], %199 {strides = array<i32>} : memref<1x1x48x128xf32, #tpu.memory_space<vmem>>, vector<1x1x8x128xf32>,
    %c0_111 = arith.constant 0 : index
    %c0_112 = arith.constant 0 : index
    %c40 = arith.constant 40 : index
    %c0_113 = arith.constant 0 : index
    %200 = vector.load %arg6[%c0_111, %c0_112, %c40, %c0_113] : memref<1x1x48x128xf32, #tpu.memory_space<vmem>>, vector<1x1x8x128xf32>
    %201 = vector.shape_cast %200 : vector<1x1x8x128xf32> to vector<8x128xf32>
    %202 = arith.addf %201, %169 : vector<8x128xf32>
    %c0_114 = arith.constant 0 : index
    %c0_115 = arith.constant 0 : index
    %c40_116 = arith.constant 40 : index
    %c0_117 = arith.constant 0 : index
    %203 = vector.load %arg6[%c0_114, %c0_115, %c40_116, %c0_117] : memref<1x1x48x128xf32, #tpu.memory_space<vmem>>, vector<1x1x8x128xf32>
    %204 = vector.shape_cast %203 : vector<1x1x8x128xf32> to vector<8x128xf32>
    %205 = vector.shape_cast %202 : vector<8x128xf32> to vector<1x1x8x128xf32>
    tpu.vector_store %arg6[%c0_114, %c0_115, %c40_116, %c0_117], %205 {strides = array<i32>} : memref<1x1x48x128xf32, #tpu.memory_space<vmem>>, vector<1x1x8x128xf32>,
    return
  }
  func.func @transform_0(%arg0: i32, %arg1: i32, %arg2: i32) -> (i32, i32) {
    %c0_i32 = arith.constant 0 : i32
    %c0_i32_0 = arith.constant 0 : i32
    %c0_i32_1 = arith.constant 0 : i32
    return %c0_i32, %c0_i32_0 : i32, i32
  }
  func.func @transform_1(%arg0: i32, %arg1: i32, %arg2: i32) -> (i32, i32, i32, i32) {
    %c1_i32 = arith.constant 1 : i32
    %0 = arith.muli %arg0, %c1_i32 : i32
    %1 = arith.addi %0, %arg2 : i32
    %c0_i32 = arith.constant 0 : i32
    %c0_i32_0 = arith.constant 0 : i32
    %c0_i32_1 = arith.constant 0 : i32
    return %arg1, %c0_i32, %1, %c0_i32_0 : i32, i32, i32, i32
  }
  func.func @transform_2(%arg0: i32, %arg1: i32, %arg2: i32) -> (i32, i32, i32, i32) {
    %c1_i32 = arith.constant 1 : i32
    %0 = arith.muli %arg0, %c1_i32 : i32
    %1 = arith.addi %0, %arg2 : i32
    %c0_i32 = arith.constant 0 : i32
    %c0_i32_0 = arith.constant 0 : i32
    %c0_i32_1 = arith.constant 0 : i32
    return %arg1, %c0_i32, %1, %c0_i32_0 : i32, i32, i32, i32
  }
  func.func @transform_3(%arg0: i32, %arg1: i32, %arg2: i32) -> (i32, i32, i32, i32) {
    %c0_i32 = arith.constant 0 : i32
    %c0_i32_0 = arith.constant 0 : i32
    %c0_i32_1 = arith.constant 0 : i32
    return %arg0, %arg1, %c0_i32, %c0_i32_0 : i32, i32, i32, i32
  }
}

</mosaic_0001>

<llo_original>
// kernel: tpu_custom_call.1
$region0: #{tpu_custom_call.1}
  #allocation0 [shape = 'u32[]', space=smem, size = 0x4, offset = 0x4, fixed_abs, tag = 'smem constant byte address 0x4 - core index']
  #allocation1 [shape = 'u32[144,128]{1,0:T(1,128)}', space=vmem, size = 0x12000, scoped, tag = 'internal scratch']
  %s0 = inlined_call_operand.hbm [shape: f32[3,4], index: 0, kind: input, shape index: {}]
  %s1 = inlined_call_operand.hbm [shape: f32[3,13,8,128], index: 1, kind: input, shape index: {}]
  %s2 = inlined_call_operand.hbm [shape: f32[3,6,8,128], index: 2, kind: input, shape index: {}]
  %s3 = inlined_call_operand.hbm [shape: f32[1,3,48,128], index: 3, kind: output, shape index: {}]
  %s4 = sld [smem:[#allocation0]]
  $region61: #{tpu_custom_call.1} parent=0
    _
  %s6 = ssub.s32 1, %s4
  %s7 = scalar_select 0, %s6, %s4
  $region1: #{tpu_custom_call.1} parent=0
    #allocation2 [shape = 'u8[2048]{0}', space=smem, size = 0x800, scoped, tag = 'input window, operand 0, single buffered']
    #allocation3 [shape = 's32[2]{0}', space=sflag, size = 0x8, scoped, tag = 'scoped memory for tpu_custom_call.1']
    #allocation4 [shape = 's32[2]{0}', space=sflag, size = 0x8, scoped, tag = 'scoped memory for tpu_custom_call.1']
    #allocation5 [shape = 's32[2]{0}', space=sflag, size = 0x8, scoped, tag = 'scoped memory for tpu_custom_call.1']
    #allocation6 [shape = 'u8[106496]{0}', space=vmem, size = 0x1a000, scoped, tag = 'input window, operand 1']
    #allocation7 [shape = 'u8[49152]{0}', space=vmem, size = 0xc000, scoped, tag = 'input window, operand 2']
    #allocation8 [shape = 's32[2]{0}', space=sflag, size = 0x8, scoped, tag = 'scoped memory for tpu_custom_call.1']
    #allocation9 [shape = 'u8[49152]{0}', space=vmem, size = 0xc000, scoped, tag = 'output window, operand 0']
    %8 = vsyncpa [#allocation5], 0
    %9 = vsyncpa [#allocation3], 0
    %s10 = scalar_lea.sflag [#allocation3], 1
    %11 = vsyncpa %s10, 0
    %12 = vsyncpa [#allocation8], 0
    %s13 = scalar_lea.sflag [#allocation8], 1
    %14 = vsyncpa %s13, 0
    %15 = vsyncpa [#allocation4], 0
    %s16 = scalar_lea.sflag [#allocation4], 1
    %17 = vsyncpa %s16, 0
    loop: start=0, step=1, limit=5
    $region2: #{tpu_custom_call.1} parent=1 // loop_pre_header
      _
    $region3: #{tpu_custom_call.1} parent=1 // loop_header
      %s19 = sphi 0, %s23
      %p20 = scmp.ge.s32.totalorder %s19, 5
      %s26 = sphi 0, %s45
      %s27 = sphi 0, %s41
      %s28 = sphi 0, %s37
      %s29 = sphi 0, %s26
      %s30 = sphi 0, %s27
      %s31 = sphi 0, %s28
      %s32 = sphi 0, %s29
      %s33 = sphi 0, %s30
      %s34 = sphi 0, %s31
      %s46 = sphi 0, %s46
      %s48 = sphi 0, %s46
      %s49 = sphi 0, %s48
      %s63 = sphi 0, %s49
      %s73 = sphi 0, %s75
      %s76 = sphi 0, %s73
      %s77 = sphi 0, %s76
      %s93 = sphi 0, %s77
      %s103 = sphi 0, %s105
      %s106 = sphi 0, %s103
      %s107 = sphi 0, %s106
      %s123 = sphi 0, %s107
      %s131 = sphi 0, %s133
      %s134 = sphi 0, %s131
      %s135 = sphi 0, %s134
      %s151 = sphi 0, %s135
    $region4: #{tpu_custom_call.1} parent=1 // loop_header_branch
      %22 = sbr.rel (%p20) target = $region8
    $region5: #{tpu_custom_call.1} parent=1 // loop_body
      %s24 = ssub.s32 %s19, 1
      %s25 = ssub.s32 %s19, 2
      %s35 = sadd.s32 1, %s28
      %p36 = scmp.ge.s32.totalorder %s35, 1
      %s37 = scalar_select %p36, 0, %s35
      %s38 = sadd.s32 1, %s27
      %s39 = scalar_select %p36, %s38, %s27
      %p40 = scmp.ge.s32.totalorder %s39, 3
      %s41 = scalar_select %p40, 0, %s39
      %s42 = sadd.s32 1, %s26
      %s43 = scalar_select %p40, %s42, %s26
      %p44 = scmp.ge.s32.totalorder %s43, 1
      %s45 = scalar_select %p44, 0, %s43
      %s47 = sadd.s32 %s46, 1
      %p50 = scmp.eq.s32.totalorder %s19, 2
      %p51 = scmp.ne.s32.totalorder %s46, %s48
      %p52 = scmp.eq.s32.totalorder %s19, 0
      %p53 = por %p51, %p52
      %p54 = scmp.ne.s32.totalorder %s46, %s48
      %p55 = scmp.eq.s32.totalorder %s24, 2
      %p56 = por %p54, %p55
      %p57 = scmp.ne.s32.totalorder %s48, %s49
      %p58 = scmp.eq.s32.totalorder %s24, 0
      %p59 = por %p57, %p58
      %p60 = scmp.ne.s32.totalorder %s48, %s49
      %p61 = scmp.eq.s32.totalorder %s25, 2
      %p62 = por %p60, %p61
      %p64 = scmp.ne.s32.totalorder %s49, %s63
      %p65 = scmp.eq.s32.totalorder %s25, 0
      %p66 = por %p64, %p65
      %s67 = sadd.s32 %s26, %s28
      %s68 = sadd.s32 %s45, %s37
      %s69 = ssub.s32 %s27, %s41
      %s70 = ssub.s32 %s67, %s68
      %s71 = sor.u32 %s69, %s70
      %p72 = scmp.eq.s32.totalorder %s71, 0
      %s74 = sadd.s32 %s73, 1
      %s75 = scalar_select %p72, %s73, %s74
      %p78 = pneg %p72
      %p79 = scmp.eq.s32.totalorder %s19, 2
      %p80 = por %p78, %p79
      %p81 = scmp.ne.s32.totalorder %s73, %s76
      %p82 = scmp.eq.s32.totalorder %s19, 0
      %p83 = por %p81, %p82
      %p84 = scmp.ne.s32.totalorder %s73, %s76
      %p85 = scmp.eq.s32.totalorder %s24, 2
      %p86 = por %p84, %p85
      %p87 = scmp.ne.s32.totalorder %s76, %s77
      %p88 = scmp.eq.s32.totalorder %s24, 0
      %p89 = por %p87, %p88
      %p90 = scmp.ne.s32.totalorder %s76, %s77
      %p91 = scmp.eq.s32.totalorder %s25, 2
      %p92 = por %p90, %p91
      %p94 = scmp.ne.s32.totalorder %s77, %s93
      %p95 = scmp.eq.s32.totalorder %s25, 0
      %p96 = por %p94, %p95
      %s97 = sadd.s32 %s26, %s28
      %s98 = sadd.s32 %s45, %s37
      %s99 = ssub.s32 %s27, %s41
      %s100 = ssub.s32 %s97, %s98
      %s101 = sor.u32 %s99, %s100
      %p102 = scmp.eq.s32.totalorder %s101, 0
      %s104 = sadd.s32 %s103, 1
      %s105 = scalar_select %p102, %s103, %s104
      %p108 = pneg %p102
      %p109 = scmp.eq.s32.totalorder %s19, 2
      %p110 = por %p108, %p109
      %p111 = scmp.ne.s32.totalorder %s103, %s106
      %p112 = scmp.eq.s32.totalorder %s19, 0
      %p113 = por %p111, %p112
      %p114 = scmp.ne.s32.totalorder %s103, %s106
      %p115 = scmp.eq.s32.totalorder %s24, 2
      %p116 = por %p114, %p115
      %p117 = scmp.ne.s32.totalorder %s106, %s107
      %p118 = scmp.eq.s32.totalorder %s24, 0
      %p119 = por %p117, %p118
      %p120 = scmp.ne.s32.totalorder %s106, %s107
      %p121 = scmp.eq.s32.totalorder %s25, 2
      %p122 = por %p120, %p121
      %p124 = scmp.ne.s32.totalorder %s107, %s123
      %p125 = scmp.eq.s32.totalorder %s25, 0
      %p126 = por %p124, %p125
      %s127 = ssub.s32 %s26, %s45
      %s128 = ssub.s32 %s27, %s41
      %s129 = sor.u32 %s127, %s128
      %p130 = scmp.eq.s32.totalorder %s129, 0
      %s132 = sadd.s32 %s131, 1
      %s133 = scalar_select %p130, %s131, %s132
      %p136 = pneg %p130
      %p137 = scmp.eq.s32.totalorder %s19, 2
      %p138 = por %p136, %p137
      %p139 = scmp.ne.s32.totalorder %s131, %s134
      %p140 = scmp.eq.s32.totalorder %s19, 0
      %p141 = por %p139, %p140
      %p142 = scmp.ne.s32.totalorder %s131, %s134
      %p143 = scmp.eq.s32.totalorder %s24, 2
      %p144 = por %p142, %p143
      %p145 = scmp.ne.s32.totalorder %s134, %s135
      %p146 = scmp.eq.s32.totalorder %s24, 0
      %p147 = por %p145, %p146
      %p148 = scmp.ne.s32.totalorder %s134, %s135
      %p149 = scmp.eq.s32.totalorder %s25, 2
      %p150 = por %p148, %p149
      %p152 = scmp.ne.s32.totalorder %s135, %s151
      %p153 = scmp.eq.s32.totalorder %s25, 0
      %p154 = por %p152, %p153
      %p155 = scmp.le.s32.totalorder 1, %s19
      %p156 = scmp.lt.s32.totalorder %s19, 4
      %p157 = pnand %p155, %p156
      %p158 = pneg %p157
      // Predicated region
      $region9: #{tpu_custom_call.1} parent=5 // pred_check
        _
      $region10: #{tpu_custom_call.1} parent=5 // pred_check_branch
        %160 = sbr.rel (%p157) target = $region12
      $region11: #{tpu_custom_call.1} parent=5 // pred_region
        %s161 = ssub.s32 %s19, 1
        // Predicated region
        $region13: #{tpu_custom_call.1} parent=11 // pred_check
          %p162 = pneg %p59
        $region14: #{tpu_custom_call.1} parent=11 // pred_check_branch
          %164 = sbr.rel (%p162) target = $region16
        $region15: #{tpu_custom_call.1} parent=11 // pred_region
          %s166 = ssub.s32 64, 64
          %167 = vsyncadd [#allocation5], %s166
          %170 = dma.hbm_to_smem %s0, 64, [#allocation2], [#allocation5]
        $region16: #{tpu_custom_call.1} parent=11 // pred_fallthru
          _
      $region12: #{tpu_custom_call.1} parent=5 // pred_fallthru
        _
      %p171 = scmp.lt.s32.totalorder %s19, 3
      // Predicated region
      $region17: #{tpu_custom_call.1} parent=5 // pred_check
        %p172 = pneg %p171
      $region18: #{tpu_custom_call.1} parent=5 // pred_check_branch
        %174 = sbr.rel (%p172) target = $region20
      $region19: #{tpu_custom_call.1} parent=5 // pred_region
        // Predicated region
        $region21: #{tpu_custom_call.1} parent=19 // pred_check
          %p175 = pneg %p83
        $region22: #{tpu_custom_call.1} parent=19 // pred_check_branch
          %177 = sbr.rel (%p175) target = $region24
        $region23: #{tpu_custom_call.1} parent=19 // pred_region
          %s178 = sand.u32 %s73, 1
          %s179 = scalar_lea.sflag [#allocation3], %s178
          %s180 = sand.u32 %s73, 1
          %s181 = smul.addr %s180, 104
          %s182 = scalar_lea.vmem [#allocation6], %s181
          %s183 = sadd.s32 %s26, %s28
          %s185 = ssub.s32 1664, 1664
          %186 = vsyncadd %s179, %s185
          %s187 = smul.addr %s27, 13
          %s188 = sadd.s32 %s183, %s187
          %s189 = smul.addr %s188, 128
          %s190 = scalar_lea.hbm %s1, %s189
          %s191 = sshll.u32 %s182, 4
          %s192 = int_to_ptr.vmem [resolvable:$true] %s191
          %197 = dma.hbm_to_vmem [thread:$0]  %s190, 1664, %s192, %s179, 128, 128, 8
        $region24: #{tpu_custom_call.1} parent=19 // pred_fallthru
          _
        // Predicated region
        $region25: #{tpu_custom_call.1} parent=19 // pred_check
          %p198 = pneg %p113
        $region26: #{tpu_custom_call.1} parent=19 // pred_check_branch
          %200 = sbr.rel (%p198) target = $region28
        $region27: #{tpu_custom_call.1} parent=19 // pred_region
          %s201 = sand.u32 %s103, 1
          %s202 = scalar_lea.sflag [#allocation8], %s201
          %s203 = sand.u32 %s103, 1
          %s204 = smul.addr %s203, 48
          %s205 = scalar_lea.vmem [#allocation7], %s204
          %s206 = sadd.s32 %s26, %s28
          %s208 = ssub.s32 768, 768
          %209 = vsyncadd %s202, %s208
          %s210 = smul.addr %s27, 6
          %s211 = sadd.s32 %s206, %s210
          %s212 = smul.addr %s211, 128
          %s213 = scalar_lea.hbm %s2, %s212
          %s214 = sshll.u32 %s205, 4
          %s215 = int_to_ptr.vmem [resolvable:$true] %s214
          %220 = dma.hbm_to_vmem [thread:$0]  %s213, 768, %s215, %s202, 128, 128, 8
        $region28: #{tpu_custom_call.1} parent=19 // pred_fallthru
          _
      $region20: #{tpu_custom_call.1} parent=5 // pred_fallthru
        _
      %p221 = scmp.le.s32.totalorder 1, %s19
      %p222 = scmp.lt.s32.totalorder %s19, 4
      %p223 = pnand %p221, %p222
      %p224 = pneg %p223
      // Predicated region
      $region29: #{tpu_custom_call.1} parent=5 // pred_check
        _
      $region30: #{tpu_custom_call.1} parent=5 // pred_check_branch
        %226 = sbr.rel (%p223) target = $region32
      $region31: #{tpu_custom_call.1} parent=5 // pred_region
        %s227 = ssub.s32 %s19, 1
        // Predicated region
        $region33: #{tpu_custom_call.1} parent=31 // pred_check
          %p228 = pneg %p59
        $region34: #{tpu_custom_call.1} parent=31 // pred_check_branch
          %230 = sbr.rel (%p228) target = $region36
        $region35: #{tpu_custom_call.1} parent=31 // pred_region
          %231 = dma.done [#allocation5], 64
        $region36: #{tpu_custom_call.1} parent=31 // pred_fallthru
          _
        %s232 = sand.u32 %s76, 1
        %s233 = scalar_lea.sflag [#allocation3], %s232
        %s234 = sand.u32 %s76, 1
        %s235 = smul.addr %s234, 104
        %s236 = scalar_lea.vmem [#allocation6], %s235
        // Predicated region
        $region37: #{tpu_custom_call.1} parent=31 // pred_check
          %p237 = pneg %p89
        $region38: #{tpu_custom_call.1} parent=31 // pred_check_branch
          %239 = sbr.rel (%p237) target = $region40
        $region39: #{tpu_custom_call.1} parent=31 // pred_region
          %240 = dma.done %s233, 1664
        $region40: #{tpu_custom_call.1} parent=31 // pred_fallthru
          _
        %s241 = sand.u32 %s106, 1
        %s242 = scalar_lea.sflag [#allocation8], %s241
        %s243 = sand.u32 %s106, 1
        %s244 = smul.addr %s243, 48
        %s245 = scalar_lea.vmem [#allocation7], %s244
        // Predicated region
        $region41: #{tpu_custom_call.1} parent=31 // pred_check
          %p246 = pneg %p119
        $region42: #{tpu_custom_call.1} parent=31 // pred_check_branch
          %248 = sbr.rel (%p246) target = $region44
        $region43: #{tpu_custom_call.1} parent=31 // pred_region
          %249 = dma.done %s242, 768
        $region44: #{tpu_custom_call.1} parent=31 // pred_fallthru
          _
        %250 = sfence
        %p251 = pneg %p59
        %p252 = pneg %p56
        %s253 = sand.u32 %s76, 1
        %s254 = scalar_lea.sflag [#allocation3], %s253
        %s255 = sand.u32 %s76, 1
        %s256 = smul.addr %s255, 104
        %s257 = scalar_lea.vmem [#allocation6], %s256
        %p258 = pneg %p89
        %p259 = pneg %p86
        %s260 = sand.u32 %s106, 1
        %s261 = scalar_lea.sflag [#allocation8], %s260
        %s262 = sand.u32 %s106, 1
        %s263 = smul.addr %s262, 48
        %s264 = scalar_lea.vmem [#allocation7], %s263
        %p265 = pneg %p119
        %p266 = pneg %p116
        %p267 = pneg %p147
        %p268 = pneg %p144
        %s269 = sand.u32 %s134, 1
        %s270 = scalar_lea.sflag [#allocation4], %s269
        %s271 = sand.u32 %s134, 1
        %s272 = smul.addr %s271, 48
        %s273 = scalar_lea.vmem [#allocation9], %s272
        %s274 = sadd.s32 %s29, %s31
        %s275 = sadd.s32 %s29, %s31
        %p276 = scmp.eq.s32.totalorder %s31, 0
        // Predicated region
        $region45: #{tpu_custom_call.1} parent=31 // pred_check
          %p277 = pneg %p276
        $region46: #{tpu_custom_call.1} parent=31 // pred_check_branch
          %279 = sbr.rel (%p277) target = $region48
        $region47: #{tpu_custom_call.1} parent=31 // pred_region
          %280 = vst [vmem:[%s273] sm:$0xff] 0.0
          %281 = vst [vmem:[%s273 + $0x8] sm:$0xff] 0.0
          %282 = vst [vmem:[%s273 + $0x10] sm:$0xff] 0.0
          %283 = vst [vmem:[%s273 + $0x18] sm:$0xff] 0.0
          %284 = vst [vmem:[%s273 + $0x20] sm:$0xff] 0.0
          %285 = vst [vmem:[%s273 + $0x28] sm:$0xff] 0.0
        $region48: #{tpu_custom_call.1} parent=31 // pred_fallthru
          _
        %s286 = smul.u32 %s30, 128
        %s287 = sld [smem:[#allocation2 + %s286]]
        %s288 = sadd.s32 %s286, 1
        %s289 = sld [smem:[#allocation2 + %s288]]
        %s290 = sadd.s32 %s286, 2
        %s291 = sld [smem:[#allocation2 + %s290]]
        %s292 = sadd.s32 %s286, 3
        %s293 = sld [smem:[#allocation2 + %s292]]
        %v294 = vld [vmem:[%s245] sm:$0xff]
        %vm295 = vcmp.eq.f32.partialorder %v294, 1.0
        %vm296 = vcmp.eq.f32.partialorder %v294, 0.0
        %v297 = vld [vmem:[%s236] sm:$0xff]
        %v298 = vmax.f32 %v297, 0.0
        %v299 = vand.u32 2147483647, %v297
        %v300 = vsub.f32 0.0, %v299
        %v301 = vmul.f32 %v300, 1.442695
        %v302 = vpow.pop %v301
        %v303 = vadd.f32 %v302, 1.0
        %v304 = vlog2.pop %v303
        %v305 = vmul.f32 %v304, 0.6931472
        %v306 = vmul.f32 -0.5, %v302
        %v307 = vadd.f32 %v306, 1.0
        %v308 = vmul.f32 %v307, %v302
        %v309 = vand.u32 2147483647, %v302
        %vm310 = vcmp.lt.f32.partialorder %v309, 0.0004427343
        %v311 = vsel %vm310, %v308, %v305
        %v312 = vadd.f32 %v298, %v311
        %v313 = vsel %vm296, %v312, 0.0
        %v314 = vadd.f32 %v313, 0.0
        %s315 = scalar_lea.vmem %s236, 8 [#allocation6]
        %v316 = vld [vmem:[%s315] sm:$0xff]
        %v317 = vxor.u32 %v316, 2147483648
        %v318 = vmul.f32 %v317, 1.442695
        %v319 = vpow.pop %v318
        %v320 = vadd.f32 %v319, 1.0
        %v321 = vrcp.pop %v320
        %v322 = vmul.f32 1.0, %v321
        %s323 = scalar_lea.vmem %s236, 16 [#allocation6]
        %v324 = vld [vmem:[%s323] sm:$0xff]
        %v325 = vxor.u32 %v324, 2147483648
        %v326 = vmul.f32 %v325, 1.442695
        %v327 = vpow.pop %v326
        %v328 = vadd.f32 %v327, 1.0
        %v329 = vrcp.pop %v328
        %v330 = vmul.f32 1.0, %v329
        %s331 = scalar_lea.vmem %s236, 24 [#allocation6]
        %v332 = vld [vmem:[%s331] sm:$0xff]
        %s333 = scalar_lea.vmem %s236, 32 [#allocation6]
        %v334 = vld [vmem:[%s333] sm:$0xff]
        %v335 = vmul.f32 %v332, 1.442695
        %v336 = vpow.pop %v335
        %v337 = vstv %s287
        %v338 = vmul.f32 %v336, %v337
        %v339 = vmul.f32 %v334, 1.442695
        %v340 = vpow.pop %v339
        %v341 = vstv %s289
        %v342 = vmul.f32 %v340, %v341
        %s343 = scalar_lea.vmem %s245, 8 [#allocation7]
        %v344 = vld [vmem:[%s343] sm:$0xff]
        %s345 = scalar_lea.vmem %s245, 16 [#allocation7]
        %v346 = vld [vmem:[%s345] sm:$0xff]
        %s347 = scalar_lea.vmem %s245, 24 [#allocation7]
        %v348 = vld [vmem:[%s347] sm:$0xff]
        %s349 = scalar_lea.vmem %s245, 32 [#allocation7]
        %v350 = vld [vmem:[%s349] sm:$0xff]
        %v351 = vmul.f32 %v338, 0.5
        %v352 = vadd.f32 %v322, %v351
        %v353 = vmul.f32 %v348, 0.5
        %v354 = vadd.f32 %v344, %v353
        %v355 = vmin.f32 %v352, %v354
        %v356 = vsub.f32 %v322, %v351
        %v357 = vsub.f32 %v344, %v353
        %v358 = vmax.f32 %v356, %v357
        %v359 = vsub.f32 %v355, %v358
        %v360 = vmax.f32 %v359, 0.0
        %v361 = vmul.f32 %v342, 0.5
        %v362 = vadd.f32 %v330, %v361
        %v363 = vmul.f32 %v350, 0.5
        %v364 = vadd.f32 %v346, %v363
        %v365 = vmin.f32 %v362, %v364
        %v366 = vsub.f32 %v330, %v361
        %v367 = vsub.f32 %v346, %v363
        %v368 = vmax.f32 %v366, %v367
        %v369 = vsub.f32 %v365, %v368
        %v370 = vmax.f32 %v369, 0.0
        %v371 = vmul.f32 %v360, %v370
        %v372 = vmul.f32 %v338, %v342
        %v373 = vand.u32 2147483647, %v372
        %v374 = vmul.f32 %v348, %v350
        %v375 = vand.u32 2147483647, %v374
        %v376 = vadd.f32 %v373, %v375
        %v377 = vsub.f32 %v376, %v371
        %v378 = vadd.f32 %v377, 1e-06
        %v379 = vrcp.pop %v378
        %v380 = vmul.f32 %v371, %v379
        %v381 = vmul.f32 %v297, %v380
        %v382 = vsub.f32 %v312, %v381
        %v383 = vsel %vm295, %v382, 0.0
        %v384 = vadd.f32 %v383, 0.0
        %v385 = vstv %s291
        %v386 = vmul.f32 %v348, %v385
        %v387 = vadd.f32 %v386, 1e-06
        %v388 = vlog2.pop %v387
        %v389 = vmul.f32 %v388, 0.6931472
        %v390 = vstv %s293
        %v391 = vmul.f32 %v350, %v390
        %v392 = vadd.f32 %v391, 1e-06
        %v393 = vlog2.pop %v392
        %v394 = vmul.f32 %v393, 0.6931472
        %v395 = vsub.f32 %v322, %v344
        %v396 = vmul.f32 %v395, %v395
        %v397 = vsub.f32 %v330, %v346
        %v398 = vmul.f32 %v397, %v397
        %v399 = vadd.f32 %v396, %v398
        %v400 = vsub.f32 %v332, %v389
        %v401 = vmul.f32 %v400, %v400
        %v402 = vadd.f32 %v399, %v401
        %v403 = vsub.f32 %v334, %v394
        %v404 = vmul.f32 %v403, %v403
        %v405 = vadd.f32 %v402, %v404
        %v406 = vsel %vm295, %v405, 0.0
        %v407 = vadd.f32 %v406, 0.0
        %s408 = scalar_lea.vmem %s245, 40 [#allocation7]
        %v409 = vld [vmem:[%s408] sm:$0xff]
        %v410 = vcvt.f32.s32.to.zero.pseudo %v409
        %s411 = scalar_lea.vmem %s236, 40 [#allocation6]
        %v412 = vld [vmem:[%s411] sm:$0xff]
        %v413 = vld [vmem:[%s411 + $0x8] sm:$0xff]
        %v414 = vld [vmem:[%s411 + $0x10] sm:$0xff]
        %v415 = vld [vmem:[%s411 + $0x18] sm:$0xff]
        %v416 = vld [vmem:[%s411 + $0x20] sm:$0xff]
        %v417 = vld [vmem:[%s411 + $0x28] sm:$0xff]
        %v418 = vld [vmem:[%s411 + $0x30] sm:$0xff]
        %v419 = vld [vmem:[%s411 + $0x38] sm:$0xff]
        %v420 = vmax.f32 %v412, %v416
        %v421 = vmax.f32 %v413, %v417
        %v422 = vmax.f32 %v414, %v418
        %v423 = vmax.f32 %v415, %v419
        %v424 = vmax.f32 %v420, %v421
        %v425 = vmax.f32 %v422, %v423
        %v426 = vmax.f32 %v424, %v425
        %v427 = vsub.f32 %v412, %v426
        %v428 = vsub.f32 %v413, %v426
        %v429 = vsub.f32 %v414, %v426
        %v430 = vsub.f32 %v415, %v426
        %v431 = vsub.f32 %v416, %v426
        %v432 = vsub.f32 %v417, %v426
        %v433 = vsub.f32 %v418, %v426
        %v434 = vsub.f32 %v419, %v426
        %v435 = vmul.f32 %v427, 1.442695
        %v436 = vpow.pop %v435
        %v437 = vmul.f32 %v428, 1.442695
        %v438 = vpow.pop %v437
        %v439 = vmul.f32 %v429, 1.442695
        %v440 = vpow.pop %v439
        %v441 = vmul.f32 %v430, 1.442695
        %v442 = vpow.pop %v441
        %v443 = vmul.f32 %v431, 1.442695
        %v444 = vpow.pop %v443
        %v445 = vmul.f32 %v432, 1.442695
        %v446 = vpow.pop %v445
        %v447 = vmul.f32 %v433, 1.442695
        %v448 = vpow.pop %v447
        %v449 = vmul.f32 %v434, 1.442695
        %v450 = vpow.pop %v449
        %v451 = vadd.f32 %v436, %v438
        %v452 = vadd.f32 %v451, %v440
        %v453 = vadd.f32 %v452, %v442
        %v454 = vadd.f32 %v453, %v444
        %v455 = vadd.f32 %v454, %v446
        %v456 = vadd.f32 %v455, %v448
        %v457 = vadd.f32 %v456, %v450
        %vm458 = vcmp.eq.s32.totalorder %v410, 0
        %vm459 = vcmp.eq.s32.totalorder %v410, 1
        %vm460 = vcmp.eq.s32.totalorder %v410, 2
        %vm461 = vcmp.eq.s32.totalorder %v410, 3
        %vm462 = vcmp.eq.s32.totalorder %v410, 4
        %vm463 = vcmp.eq.s32.totalorder %v410, 5
        %vm464 = vcmp.eq.s32.totalorder %v410, 6
        %vm465 = vcmp.eq.s32.totalorder %v410, 7
        %v466 = vsel %vm458, %v412, 0.0
        %v467 = vsel %vm459, %v413, 0.0
        %v468 = vsel %vm460, %v414, 0.0
        %v469 = vsel %vm461, %v415, 0.0
        %v470 = vsel %vm462, %v416, 0.0
        %v471 = vsel %vm463, %v417, 0.0
        %v472 = vsel %vm464, %v418, 0.0
        %v473 = vsel %vm465, %v419, 0.0
        %v474 = vadd.f32 %v466, %v467
        %v475 = vadd.f32 %v474, %v468
        %v476 = vadd.f32 %v475, %v469
        %v477 = vadd.f32 %v476, %v470
        %v478 = vadd.f32 %v477, %v471
        %v479 = vadd.f32 %v478, %v472
        %v480 = vadd.f32 %v479, %v473
        %v481 = vadd.f32 %v480, 0.0
        %v482 = vlog2.pop %v457
        %v483 = vmul.f32 %v482, 0.6931472
        %v484 = vadd.f32 %v426, %v483
        %v485 = vsub.f32 %v484, %v481
        %v486 = vsel %vm295, %v485, 0.0
        %v487 = vadd.f32 %v486, 0.0
        %v488 = vsel %vm295, 1, 0
        %v489 = vcvt.s32.f32 %v488
        %v490 = vadd.f32 %v489, 0.0
        %v491 = vsel %vm296, 1, 0
        %v492 = vcvt.s32.f32 %v491
        %v493 = vadd.f32 %v492, 0.0
        %v494 = vld [vmem:[%s273] sm:$0xff]
        %v495 = vadd.f32 %v494, %v314
        %496 = vst [vmem:[%s273] sm:$0xff] %v495
        %v497 = vld [vmem:[%s273 + $0x8] sm:$0xff]
        %v498 = vadd.f32 %v497, %v384
        %499 = vst [vmem:[%s273 + $0x8] sm:$0xff] %v498
        %v500 = vld [vmem:[%s273 + $0x10] sm:$0xff]
        %v501 = vadd.f32 %v500, %v407
        %502 = vst [vmem:[%s273 + $0x10] sm:$0xff] %v501
        %v503 = vld [vmem:[%s273 + $0x18] sm:$0xff]
        %v504 = vadd.f32 %v503, %v487
        %505 = vst [vmem:[%s273 + $0x18] sm:$0xff] %v504
        %v506 = vld [vmem:[%s273 + $0x20] sm:$0xff]
        %v507 = vadd.f32 %v506, %v490
        %508 = vst [vmem:[%s273 + $0x20] sm:$0xff] %v507
        %v509 = vld [vmem:[%s273 + $0x28] sm:$0xff]
        %v510 = vadd.f32 %v509, %v493
        %511 = vst [vmem:[%s273 + $0x28] sm:$0xff] %v510
        %s512 = sand.u32 %s134, 1
        %s513 = scalar_lea.sflag [#allocation4], %s512
        %s514 = sand.u32 %s134, 1
        %s515 = smul.addr %s514, 48
        %s516 = scalar_lea.vmem [#allocation9], %s515
        // Predicated region
        $region49: #{tpu_custom_call.1} parent=31 // pred_check
          %p517 = pneg %p144
        $region50: #{tpu_custom_call.1} parent=31 // pred_check_branch
          %519 = sbr.rel (%p517) target = $region52
        $region51: #{tpu_custom_call.1} parent=31 // pred_region
          %s521 = ssub.s32 768, 768
          %522 = vsyncadd %s513, %s521
          %s523 = smul.addr %s30, 6
          %s524 = smul.addr %s29, 18
          %s525 = sadd.s32 %s523, %s524
          %s526 = smul.addr %s525, 128
          %s527 = scalar_lea.hbm %s3, %s526
          %s528 = sshll.u32 %s516, 4
          %s529 = int_to_ptr.vmem [resolvable:$true] %s528
          %534 = dma.vmem_to_hbm [thread:$0]  %s529, 768, %s527, %s513, 128, 128, 8
        $region52: #{tpu_custom_call.1} parent=31 // pred_fallthru
          _
      $region32: #{tpu_custom_call.1} parent=5 // pred_fallthru
        _
      %p535 = scmp.le.s32.totalorder 2, %s19
      // Predicated region
      $region53: #{tpu_custom_call.1} parent=5 // pred_check
        %p536 = pneg %p535
      $region54: #{tpu_custom_call.1} parent=5 // pred_check_branch
        %538 = sbr.rel (%p536) target = $region56
      $region55: #{tpu_custom_call.1} parent=5 // pred_region
        %s539 = ssub.s32 %s19, 2
        // Predicated region
        $region57: #{tpu_custom_call.1} parent=55 // pred_check
          %p540 = pneg %p150
        $region58: #{tpu_custom_call.1} parent=55 // pred_check_branch
          %542 = sbr.rel (%p540) target = $region60
        $region59: #{tpu_custom_call.1} parent=55 // pred_region
          %s543 = sand.u32 %s135, 1
          %s544 = scalar_lea.sflag [#allocation4], %s543
          %s545 = sand.u32 %s135, 1
          %s546 = smul.addr %s545, 48
          %s547 = scalar_lea.vmem [#allocation9], %s546
          %548 = dma.done %s544, 768
        $region60: #{tpu_custom_call.1} parent=55 // pred_fallthru
          _
      $region56: #{tpu_custom_call.1} parent=5 // pred_fallthru
        _
    $region6: #{tpu_custom_call.1} parent=1 // loop_footer
      %s23 = sadd.s32 1, %s19
    $region7: #{tpu_custom_call.1} parent=1 // loop_footer_branch
      %18 = sbr.rel target = $region3
    $region8: #{tpu_custom_call.1} parent=1 // loop_exit
      _
    %549 = vsyncpa [#allocation3], 1
    %s550 = scalar_lea.sflag [#allocation3], 1
    %551 = vsyncpa %s550, 1
    %552 = vsyncpa [#allocation8], 1
    %s553 = scalar_lea.sflag [#allocation8], 1
    %554 = vsyncpa %s553, 1
    %555 = vsyncpa [#allocation4], 1
    %s556 = scalar_lea.sflag [#allocation4], 1
    %557 = vsyncpa %s556, 1
    %558 = vsyncpa [#allocation5], 1
    %s559 = scalar_lea.sflag [#allocation5], 1
    %560 = vsyncpa %s559, 1

</llo_original>
